<compile_context>
chip_gen: v7x
topology: tpu7x:2x2x1
jax: 0.10.0
libtpu: 0.0.40
codegen_flags: <defaults>
</compile_context>

<pallas_src>
import jax
import jax.numpy as jnp
from jax.experimental import pallas as pl
from jax.experimental.pallas import tpu as pltpu

# ----------------------------- problem sizes --------------------------------
N, C_IN, C_OUT, H, W = 2, 4, 8, 16, 16
K = 3
PAD = K // 2
EPS = 1e-5


# ------------------------------ Pallas kernel -------------------------------
def morph_kernel(tw_ref,   # (2*N*C_IN, 9)  binarized tap weights: [ero rows | dil rows]
                 wb_ref,   # (N*C_OUT, 2*N*C_IN) batch-block-diag 1x1 weight, ero|dil folded
                 gb_ref,   # (C_OUT, 2)     [gamma, beta]
                 x_ref,    # (N*C_IN, H*W)  lane-dense input slab (plain reshape of NCHW)
                 out_ref): # (N*C_OUT, H*W)
    rows, hw = x_ref.shape
    x = x_ref[...]

    # ---- hoisted boundary masks (lane = i*W + j within one image) ----------
    lane = jax.lax.broadcasted_iota(jnp.int32, (1, hw), 1)
    col = jnp.bitwise_and(lane, W - 1)                 # j
    left, right = col == 0, col == W - 1
    top, bottom = lane < W, lane >= (H - 1) * W
    edge = {
        (0, -1): left, (0, 1): right, (-1, 0): top, (1, 0): bottom,
        (-1, -1): jnp.logical_or(top, left),
        (-1, 1): jnp.logical_or(top, right),
        (1, -1): jnp.logical_or(bottom, left),
        (1, 1): jnp.logical_or(bottom, right),
    }

    def tap(slab, si, sj, fill):
        """`slab` shifted by (si, sj) within each image row; `fill` outside."""
        d = si * W + sj
        v = pltpu.roll(slab, shift=(-d) % hw, axis=1) if d != 0 else slab
        m = edge.get((si, sj))
        return v if m is None else jnp.where(m, fill, v)

    # ---- depthwise binarized 3x3 convs (zero pad), taps shared by branches ----
    # dilation branch: -conv(-x, mask_d) == conv(x, mask_d) (linear, zero pad).
    tw = tw_ref[...]                                   # load once
    we, wd = tw[0:rows], tw[rows:2 * rows]             # (rows, 9) each
    conv_e = jnp.zeros((rows, hw), jnp.float32)
    conv_d = jnp.zeros((rows, hw), jnp.float32)
    for k in range(K * K):
        si, sj = k // K - PAD, k % K - PAD
        win = tap(x, si, sj, 0.0)                      # shared window tap
        conv_e = conv_e + we[:, k:k + 1] * win
        conv_d = conv_d + wd[:, k:k + 1] * win

    # ---- separable 3x3 / stride-1 / pad-1 max pool (-inf padding) ------------
    cc = jnp.concatenate([conv_e, conv_d], axis=0)     # stacked (ero|dil) slab
    neg = -jnp.inf
    rm = jnp.maximum(jnp.maximum(tap(cc, 0, -1, neg), cc), tap(cc, 0, 1, neg))
    pooled = jnp.maximum(jnp.maximum(tap(rm, -1, 0, neg), rm), tap(rm, 1, 0, neg))

    # ---- 1x1 pointwise conv: one MXU matmul (batch block-diag, ero+dil folded) --
    y = jnp.dot(wb_ref[...], pooled,
                preferred_element_type=jnp.float32)    # (N*C_OUT, hw), rows = n*C_OUT+o
    # (pointwise bias omitted: exactly cancelled by training-mode BN mean subtraction)

    # ---- fused training-mode BatchNorm (biased var) + ReLU --------------------
    gb = gb_ref[...]
    c_out = gb.shape[0]
    nb = y.shape[0] // c_out
    inv_n = jnp.float32(1.0 / (nb * hw))
    rs = jnp.sum(y, axis=1, keepdims=True)             # (nb*C_OUT, 1)
    rq = jnp.sum(y * y, axis=1, keepdims=True)
    mean = sum(rs[b * c_out:(b + 1) * c_out] for b in range(nb)) * inv_n   # (C_OUT,1)
    ex2 = sum(rq[b * c_out:(b + 1) * c_out] for b in range(nb)) * inv_n
    var = ex2 - mean * mean
    scale = gb[:, 0:1] * jax.lax.rsqrt(var + EPS)      # gamma / sqrt(var+eps)
    bias = gb[:, 1:2] - scale * mean                   # beta - scale*mean
    scale2 = jnp.concatenate([scale] * nb, axis=0)     # (nb*C_OUT, 1)
    bias2 = jnp.concatenate([bias] * nb, axis=0)
    out_ref[...] = jnp.maximum(y * scale2 + bias2, 0.0)  # single dense store


# -------------------------------- glue --------------------------------------
def binarize_flat(wgt):
    """MaxBinarize: 1.0 where the weight equals its per-channel max, else 0.0.
    wgt: (C, 1, K, K) -> (C, K*K) float32 mask."""
    flat = wgt.reshape(wgt.shape[0], -1)
    mx = flat.max(axis=1, keepdims=True)
    return (flat == mx).astype(jnp.float32)


@jax.jit
def morphological_layer(x, w_ero, w_dil, pw, gamma, beta):
    n, c, h, w = x.shape
    hw = h * w
    # Parameter preprocessing (tiny; done by XLA outside the kernel).
    we = jnp.tile(binarize_flat(w_ero), (n, 1))              # (n*c, 9), row = n*c_in + ch
    wd = jnp.tile(binarize_flat(w_dil), (n, 1))
    tw = jnp.concatenate([we, wd], axis=0)                   # (2*n*c, 9)
    pw2 = pw.reshape(C_OUT, c)                               # (C_OUT, C_IN)
    bd = jnp.kron(jnp.eye(n, dtype=jnp.float32), pw2)        # (n*C_OUT, n*C_IN) block-diag
    wbig = jnp.concatenate([bd, bd], axis=1)                 # folds pool_e + pool_d
    gb = jnp.stack([gamma, beta], axis=1)                    # (C_OUT, 2)
    x2 = x.reshape(n * c, hw)                                # lane-dense, NO transpose

    vmem = pl.BlockSpec(memory_space=pltpu.MemorySpace.VMEM)
    out2 = pl.pallas_call(
        morph_kernel,
        out_shape=jax.ShapeDtypeStruct((n * C_OUT, hw), jnp.float32),
        in_specs=[vmem] * 4,
        out_specs=vmem,
    )(tw, wbig, gb, x2)
    # TODO(synk): for scaled shapes, add a grid over the H*W (lane) axis with
    # dimension_semantics=("parallel",) to use both v7x TensorCores and size
    # slabs against 64 MiB VMEM; at (2,4,16,16) per-step overhead dominates.
    return out2.reshape(n, C_OUT, h, w)                      # NO transpose back


# ----------------------------- pure-JAX reference ----------------------------
def reference(x, w_ero, w_dil, pw, pb, gamma, beta):
    hp = jax.lax.Precision.HIGHEST

    def binarize4(wgt):
        flat = wgt.reshape(wgt.shape[0], -1)
        mx = flat.max(axis=1).reshape(-1, 1, 1, 1)
        return (wgt == mx).astype(jnp.float32)

    def dwconv(inp, wgt):
        return jax.lax.conv_general_dilated(
            inp, wgt, window_strides=(1, 1),
            padding=((PAD, PAD), (PAD, PAD)),
            dimension_numbers=("NCHW", "OIHW", "NCHW"),
            feature_group_count=inp.shape[1], precision=hp)

    def maxpool3(inp):
        return jax.lax.reduce_window(
            inp, -jnp.inf, jax.lax.max, (1, 1, 3, 3), (1, 1, 1, 1),
            padding=((0, 0), (0, 0), (1, 1), (1, 1)))

    ero = maxpool3(dwconv(x, binarize4(w_ero)))
    dil = maxpool3(-dwconv(-x, binarize4(w_dil)))
    s = ero + dil
    y = jnp.einsum("oc,nchw->nohw", pw.reshape(C_OUT, C_IN), s, precision=hp) \
        + pb.reshape(1, -1, 1, 1)
    mean = y.mean(axis=(0, 2, 3), keepdims=True)
    var = y.var(axis=(0, 2, 3), keepdims=True)          # biased (training-mode BN)
    y = gamma.reshape(1, -1, 1, 1) * (y - mean) / jnp.sqrt(var + EPS) \
        + beta.reshape(1, -1, 1, 1)
    return jnp.maximum(y, 0.0)


# --------------------------------- main --------------------------------------
if __name__ == "__main__":
    key = jax.random.PRNGKey(0)
    k1, k2, k3, k4, k5, k6, k7 = jax.random.split(key, 7)

    x = jax.random.normal(k1, (N, C_IN, H, W), jnp.float32)
    w_ero = jax.random.normal(k2, (C_IN, 1, K, K), jnp.float32)   # erosion depthwise weight
    w_dil = jax.random.normal(k3, (C_IN, 1, K, K), jnp.float32)   # dilation depthwise weight
    pw = 0.5 * jax.random.normal(k4, (C_OUT, C_IN, 1, 1), jnp.float32)
    pb = 0.1 * jax.random.normal(k5, (C_OUT,), jnp.float32)       # used only by the reference:
    gamma = 1.0 + 0.1 * jax.random.normal(k6, (C_OUT,), jnp.float32)
    beta = 0.1 * jax.random.normal(k7, (C_OUT,), jnp.float32)
    # TODO(synk): BatchNorm running-stat updates (buffers) are training side-effects
    # and are not materialized; forward normalization uses batch statistics as in
    # PyTorch's default training-mode forward. The pointwise-conv bias is dropped
    # from the kernel because training-mode BN cancels it exactly.

    out = jax.block_until_ready(
        morphological_layer(x, w_ero, w_dil, pw, gamma, beta))

    ref = reference(x, w_ero, w_dil, pw, pb, gamma, beta)
    assert out.shape == (N, C_OUT, H, W), out.shape
    err = float(jnp.max(jnp.abs(out - ref)))
    # Headroom for MXU f32 accumulation order and E[y^2]-mean^2 variance form
    # vs HIGHEST-precision two-pass XLA reference.
    assert err < 2e-3, f"mismatch vs reference: {err}"
    print("KERNEL_OK")
</pallas_src>

<mosaic_0001>
module attributes {stable_mosaic.version = 11 : i64} {
  func.func @morph_kernel(%arg0: memref<16x9xf32, #tpu.memory_space<vmem>>, %arg1: memref<16x16xf32, #tpu.memory_space<vmem>>, %arg2: memref<8x2xf32, #tpu.memory_space<vmem>>, %arg3: memref<8x256xf32, #tpu.memory_space<vmem>>, %arg4: memref<16x256xf32, #tpu.memory_space<vmem>>) attributes {dimension_semantics = [], scalar_prefetch = 0 : i64, scratch_operands = 0 : i64, tpu.core_type = #tpu.core_type<tc>} {
    %c0 = arith.constant 0 : index
    %c0_0 = arith.constant 0 : index
    %0 = vector.load %arg3[%c0, %c0_0] : memref<8x256xf32, #tpu.memory_space<vmem>>, vector<8x256xf32>
    %1 = tpu.iota {dimensions = array<i32: 1>} : vector<1x256xi32>
    %c15_i32 = arith.constant 15 : i32
    %2 = vector.broadcast %c15_i32 : i32 to vector<1x256xi32>
    %3 = arith.andi %1, %2 : vector<1x256xi32>
    %c0_i32 = arith.constant 0 : i32
    %4 = vector.broadcast %c0_i32 : i32 to vector<1x256xi32>
    %5 = arith.cmpi eq, %3, %4 : vector<1x256xi32>
    %c15_i32_1 = arith.constant 15 : i32
    %6 = vector.broadcast %c15_i32_1 : i32 to vector<1x256xi32>
    %7 = arith.cmpi eq, %3, %6 : vector<1x256xi32>
    %c16_i32 = arith.constant 16 : i32
    %8 = vector.broadcast %c16_i32 : i32 to vector<1x256xi32>
    %9 = arith.cmpi slt, %1, %8 : vector<1x256xi32>
    %c240_i32 = arith.constant 240 : i32
    %10 = vector.broadcast %c240_i32 : i32 to vector<1x256xi32>
    %11 = arith.cmpi sge, %1, %10 : vector<1x256xi32>
    %12 = arith.ori %9, %5 : vector<1x256xi1>
    %13 = arith.ori %9, %7 : vector<1x256xi1>
    %14 = arith.ori %11, %5 : vector<1x256xi1>
    %15 = arith.ori %11, %7 : vector<1x256xi1>
    %c0_2 = arith.constant 0 : index
    %c0_3 = arith.constant 0 : index
    %16 = vector.load %arg0[%c0_2, %c0_3] : memref<16x9xf32, #tpu.memory_space<vmem>>, vector<16x9xf32>
    %17 = vector.extract_strided_slice %16 {offsets = [0, 0], sizes = [8, 9], strides = [1, 1]} : vector<16x9xf32> to vector<8x9xf32>
    %18 = vector.extract_strided_slice %16 {offsets = [8, 0], sizes = [8, 9], strides = [1, 1]} : vector<16x9xf32> to vector<8x9xf32>
    %cst = arith.constant 0.000000e+00 : f32
    %19 = vector.broadcast %cst : f32 to vector<8x256xf32>
    %cst_4 = arith.constant 0.000000e+00 : f32
    %20 = vector.broadcast %cst_4 : f32 to vector<8x256xf32>
    %c17_i32 = arith.constant 17 : i32
    %21 = tpu.dynamic_rotate %0 by %c17_i32 dim 1 : vector<8x256xf32>, i32 -> vector<8x256xf32>
    %cst_5 = arith.constant 0.000000e+00 : f32
    %22 = vector.shape_cast %12 : vector<1x256xi1> to vector<1x256xi1>
    %23 = vector.broadcast %22 : vector<1x256xi1> to vector<8x256xi1>
    %24 = vector.broadcast %cst_5 : f32 to vector<8x256xf32>
    %25 = arith.select %23, %24, %21 : vector<8x256xi1>, vector<8x256xf32>
    %26 = vector.extract_strided_slice %17 {offsets = [0, 0], sizes = [8, 1], strides = [1, 1]} : vector<8x9xf32> to vector<8x1xf32>
    %27 = vector.broadcast %26 : vector<8x1xf32> to vector<8x256xf32>
    %28 = arith.mulf %27, %25 : vector<8x256xf32>
    %29 = arith.addf %19, %28 : vector<8x256xf32>
    %30 = vector.extract_strided_slice %18 {offsets = [0, 0], sizes = [8, 1], strides = [1, 1]} : vector<8x9xf32> to vector<8x1xf32>
    %31 = vector.broadcast %30 : vector<8x1xf32> to vector<8x256xf32>
    %32 = arith.mulf %31, %25 : vector<8x256xf32>
    %33 = arith.addf %20, %32 : vector<8x256xf32>
    %c16_i32_6 = arith.constant 16 : i32
    %34 = tpu.dynamic_rotate %0 by %c16_i32_6 dim 1 : vector<8x256xf32>, i32 -> vector<8x256xf32>
    %cst_7 = arith.constant 0.000000e+00 : f32
    %35 = vector.shape_cast %9 : vector<1x256xi1> to vector<1x256xi1>
    %36 = vector.broadcast %35 : vector<1x256xi1> to vector<8x256xi1>
    %37 = vector.broadcast %cst_7 : f32 to vector<8x256xf32>
    %38 = arith.select %36, %37, %34 : vector<8x256xi1>, vector<8x256xf32>
    %39 = vector.extract_strided_slice %17 {offsets = [0, 1], sizes = [8, 1], strides = [1, 1]} : vector<8x9xf32> to vector<8x1xf32>
    %40 = vector.broadcast %39 : vector<8x1xf32> to vector<8x256xf32>
    %41 = arith.mulf %40, %38 : vector<8x256xf32>
    %42 = arith.addf %29, %41 : vector<8x256xf32>
    %43 = vector.extract_strided_slice %18 {offsets = [0, 1], sizes = [8, 1], strides = [1, 1]} : vector<8x9xf32> to vector<8x1xf32>
    %44 = vector.broadcast %43 : vector<8x1xf32> to vector<8x256xf32>
    %45 = arith.mulf %44, %38 : vector<8x256xf32>
    %46 = arith.addf %33, %45 : vector<8x256xf32>
    %c15_i32_8 = arith.constant 15 : i32
    %47 = tpu.dynamic_rotate %0 by %c15_i32_8 dim 1 : vector<8x256xf32>, i32 -> vector<8x256xf32>
    %cst_9 = arith.constant 0.000000e+00 : f32
    %48 = vector.shape_cast %13 : vector<1x256xi1> to vector<1x256xi1>
    %49 = vector.broadcast %48 : vector<1x256xi1> to vector<8x256xi1>
    %50 = vector.broadcast %cst_9 : f32 to vector<8x256xf32>
    %51 = arith.select %49, %50, %47 : vector<8x256xi1>, vector<8x256xf32>
    %52 = vector.extract_strided_slice %17 {offsets = [0, 2], sizes = [8, 1], strides = [1, 1]} : vector<8x9xf32> to vector<8x1xf32>
    %53 = vector.broadcast %52 : vector<8x1xf32> to vector<8x256xf32>
    %54 = arith.mulf %53, %51 : vector<8x256xf32>
    %55 = arith.addf %42, %54 : vector<8x256xf32>
    %56 = vector.extract_strided_slice %18 {offsets = [0, 2], sizes = [8, 1], strides = [1, 1]} : vector<8x9xf32> to vector<8x1xf32>
    %57 = vector.broadcast %56 : vector<8x1xf32> to vector<8x256xf32>
    %58 = arith.mulf %57, %51 : vector<8x256xf32>
    %59 = arith.addf %46, %58 : vector<8x256xf32>
    %c1_i32 = arith.constant 1 : i32
    %60 = tpu.dynamic_rotate %0 by %c1_i32 dim 1 : vector<8x256xf32>, i32 -> vector<8x256xf32>
    %cst_10 = arith.constant 0.000000e+00 : f32
    %61 = vector.shape_cast %5 : vector<1x256xi1> to vector<1x256xi1>
    %62 = vector.broadcast %61 : vector<1x256xi1> to vector<8x256xi1>
    %63 = vector.broadcast %cst_10 : f32 to vector<8x256xf32>
    %64 = arith.select %62, %63, %60 : vector<8x256xi1>, vector<8x256xf32>
    %65 = vector.extract_strided_slice %17 {offsets = [0, 3], sizes = [8, 1], strides = [1, 1]} : vector<8x9xf32> to vector<8x1xf32>
    %66 = vector.broadcast %65 : vector<8x1xf32> to vector<8x256xf32>
    %67 = arith.mulf %66, %64 : vector<8x256xf32>
    %68 = arith.addf %55, %67 : vector<8x256xf32>
    %69 = vector.extract_strided_slice %18 {offsets = [0, 3], sizes = [8, 1], strides = [1, 1]} : vector<8x9xf32> to vector<8x1xf32>
    %70 = vector.broadcast %69 : vector<8x1xf32> to vector<8x256xf32>
    %71 = arith.mulf %70, %64 : vector<8x256xf32>
    %72 = arith.addf %59, %71 : vector<8x256xf32>
    %73 = vector.extract_strided_slice %17 {offsets = [0, 4], sizes = [8, 1], strides = [1, 1]} : vector<8x9xf32> to vector<8x1xf32>
    %74 = vector.broadcast %73 : vector<8x1xf32> to vector<8x256xf32>
    %75 = arith.mulf %74, %0 : vector<8x256xf32>
    %76 = arith.addf %68, %75 : vector<8x256xf32>
    %77 = vector.extract_strided_slice %18 {offsets = [0, 4], sizes = [8, 1], strides = [1, 1]} : vector<8x9xf32> to vector<8x1xf32>
    %78 = vector.broadcast %77 : vector<8x1xf32> to vector<8x256xf32>
    %79 = arith.mulf %78, %0 : vector<8x256xf32>
    %80 = arith.addf %72, %79 : vector<8x256xf32>
    %c255_i32 = arith.constant 255 : i32
    %81 = tpu.dynamic_rotate %0 by %c255_i32 dim 1 : vector<8x256xf32>, i32 -> vector<8x256xf32>
    %cst_11 = arith.constant 0.000000e+00 : f32
    %82 = vector.shape_cast %7 : vector<1x256xi1> to vector<1x256xi1>
    %83 = vector.broadcast %82 : vector<1x256xi1> to vector<8x256xi1>
    %84 = vector.broadcast %cst_11 : f32 to vector<8x256xf32>
    %85 = arith.select %83, %84, %81 : vector<8x256xi1>, vector<8x256xf32>
    %86 = vector.extract_strided_slice %17 {offsets = [0, 5], sizes = [8, 1], strides = [1, 1]} : vector<8x9xf32> to vector<8x1xf32>
    %87 = vector.broadcast %86 : vector<8x1xf32> to vector<8x256xf32>
    %88 = arith.mulf %87, %85 : vector<8x256xf32>
    %89 = arith.addf %76, %88 : vector<8x256xf32>
    %90 = vector.extract_strided_slice %18 {offsets = [0, 5], sizes = [8, 1], strides = [1, 1]} : vector<8x9xf32> to vector<8x1xf32>
    %91 = vector.broadcast %90 : vector<8x1xf32> to vector<8x256xf32>
    %92 = arith.mulf %91, %85 : vector<8x256xf32>
    %93 = arith.addf %80, %92 : vector<8x256xf32>
    %c241_i32 = arith.constant 241 : i32
    %94 = tpu.dynamic_rotate %0 by %c241_i32 dim 1 : vector<8x256xf32>, i32 -> vector<8x256xf32>
    %cst_12 = arith.constant 0.000000e+00 : f32
    %95 = vector.shape_cast %14 : vector<1x256xi1> to vector<1x256xi1>
    %96 = vector.broadcast %95 : vector<1x256xi1> to vector<8x256xi1>
    %97 = vector.broadcast %cst_12 : f32 to vector<8x256xf32>
    %98 = arith.select %96, %97, %94 : vector<8x256xi1>, vector<8x256xf32>
    %99 = vector.extract_strided_slice %17 {offsets = [0, 6], sizes = [8, 1], strides = [1, 1]} : vector<8x9xf32> to vector<8x1xf32>
    %100 = vector.broadcast %99 : vector<8x1xf32> to vector<8x256xf32>
    %101 = arith.mulf %100, %98 : vector<8x256xf32>
    %102 = arith.addf %89, %101 : vector<8x256xf32>
    %103 = vector.extract_strided_slice %18 {offsets = [0, 6], sizes = [8, 1], strides = [1, 1]} : vector<8x9xf32> to vector<8x1xf32>
    %104 = vector.broadcast %103 : vector<8x1xf32> to vector<8x256xf32>
    %105 = arith.mulf %104, %98 : vector<8x256xf32>
    %106 = arith.addf %93, %105 : vector<8x256xf32>
    %c240_i32_13 = arith.constant 240 : i32
    %107 = tpu.dynamic_rotate %0 by %c240_i32_13 dim 1 : vector<8x256xf32>, i32 -> vector<8x256xf32>
    %cst_14 = arith.constant 0.000000e+00 : f32
    %108 = vector.shape_cast %11 : vector<1x256xi1> to vector<1x256xi1>
    %109 = vector.broadcast %108 : vector<1x256xi1> to vector<8x256xi1>
    %110 = vector.broadcast %cst_14 : f32 to vector<8x256xf32>
    %111 = arith.select %109, %110, %107 : vector<8x256xi1>, vector<8x256xf32>
    %112 = vector.extract_strided_slice %17 {offsets = [0, 7], sizes = [8, 1], strides = [1, 1]} : vector<8x9xf32> to vector<8x1xf32>
    %113 = vector.broadcast %112 : vector<8x1xf32> to vector<8x256xf32>
    %114 = arith.mulf %113, %111 : vector<8x256xf32>
    %115 = arith.addf %102, %114 : vector<8x256xf32>
    %116 = vector.extract_strided_slice %18 {offsets = [0, 7], sizes = [8, 1], strides = [1, 1]} : vector<8x9xf32> to vector<8x1xf32>
    %117 = vector.broadcast %116 : vector<8x1xf32> to vector<8x256xf32>
    %118 = arith.mulf %117, %111 : vector<8x256xf32>
    %119 = arith.addf %106, %118 : vector<8x256xf32>
    %c239_i32 = arith.constant 239 : i32
    %120 = tpu.dynamic_rotate %0 by %c239_i32 dim 1 : vector<8x256xf32>, i32 -> vector<8x256xf32>
    %cst_15 = arith.constant 0.000000e+00 : f32
    %121 = vector.shape_cast %15 : vector<1x256xi1> to vector<1x256xi1>
    %122 = vector.broadcast %121 : vector<1x256xi1> to vector<8x256xi1>
    %123 = vector.broadcast %cst_15 : f32 to vector<8x256xf32>
    %124 = arith.select %122, %123, %120 : vector<8x256xi1>, vector<8x256xf32>
    %125 = vector.extract_strided_slice %17 {offsets = [0, 8], sizes = [8, 1], strides = [1, 1]} : vector<8x9xf32> to vector<8x1xf32>
    %126 = vector.broadcast %125 : vector<8x1xf32> to vector<8x256xf32>
    %127 = arith.mulf %126, %124 : vector<8x256xf32>
    %128 = arith.addf %115, %127 : vector<8x256xf32>
    %129 = vector.extract_strided_slice %18 {offsets = [0, 8], sizes = [8, 1], strides = [1, 1]} : vector<8x9xf32> to vector<8x1xf32>
    %130 = vector.broadcast %129 : vector<8x1xf32> to vector<8x256xf32>
    %131 = arith.mulf %130, %124 : vector<8x256xf32>
    %132 = arith.addf %119, %131 : vector<8x256xf32>
    %133 = tpu.concatenate %128, %132 in 0 : vector<8x256xf32>, vector<8x256xf32> -> vector<16x256xf32>
    %c1_i32_16 = arith.constant 1 : i32
    %134 = tpu.dynamic_rotate %133 by %c1_i32_16 dim 1 : vector<16x256xf32>, i32 -> vector<16x256xf32>
    %cst_17 = arith.constant 0xFF800000 : f32
    %135 = vector.shape_cast %5 : vector<1x256xi1> to vector<1x256xi1>
    %136 = vector.broadcast %135 : vector<1x256xi1> to vector<16x256xi1>
    %137 = vector.broadcast %cst_17 : f32 to vector<16x256xf32>
    %138 = arith.select %136, %137, %134 : vector<16x256xi1>, vector<16x256xf32>
    %139 = arith.maximumf %138, %133 : vector<16x256xf32>
    %c255_i32_18 = arith.constant 255 : i32
    %140 = tpu.dynamic_rotate %133 by %c255_i32_18 dim 1 : vector<16x256xf32>, i32 -> vector<16x256xf32>
    %cst_19 = arith.constant 0xFF800000 : f32
    %141 = vector.shape_cast %7 : vector<1x256xi1> to vector<1x256xi1>
    %142 = vector.broadcast %141 : vector<1x256xi1> to vector<16x256xi1>
    %143 = vector.broadcast %cst_19 : f32 to vector<16x256xf32>
    %144 = arith.select %142, %143, %140 : vector<16x256xi1>, vector<16x256xf32>
    %145 = arith.maximumf %139, %144 : vector<16x256xf32>
    %c16_i32_20 = arith.constant 16 : i32
    %146 = tpu.dynamic_rotate %145 by %c16_i32_20 dim 1 : vector<16x256xf32>, i32 -> vector<16x256xf32>
    %cst_21 = arith.constant 0xFF800000 : f32
    %147 = vector.shape_cast %9 : vector<1x256xi1> to vector<1x256xi1>
    %148 = vector.broadcast %147 : vector<1x256xi1> to vector<16x256xi1>
    %149 = vector.broadcast %cst_21 : f32 to vector<16x256xf32>
    %150 = arith.select %148, %149, %146 : vector<16x256xi1>, vector<16x256xf32>
    %151 = arith.maximumf %150, %145 : vector<16x256xf32>
    %c240_i32_22 = arith.constant 240 : i32
    %152 = tpu.dynamic_rotate %145 by %c240_i32_22 dim 1 : vector<16x256xf32>, i32 -> vector<16x256xf32>
    %cst_23 = arith.constant 0xFF800000 : f32
    %153 = vector.shape_cast %11 : vector<1x256xi1> to vector<1x256xi1>
    %154 = vector.broadcast %153 : vector<1x256xi1> to vector<16x256xi1>
    %155 = vector.broadcast %cst_23 : f32 to vector<16x256xf32>
    %156 = arith.select %154, %155, %152 : vector<16x256xi1>, vector<16x256xf32>
    %157 = arith.maximumf %151, %156 : vector<16x256xf32>
    %c0_24 = arith.constant 0 : index
    %c0_25 = arith.constant 0 : index
    %158 = vector.load %arg1[%c0_24, %c0_25] : memref<16x16xf32, #tpu.memory_space<vmem>>, vector<16x16xf32>
    %cst_26 = arith.constant dense<0.000000e+00> : vector<16x256xf32>
    %159 = tpu.matmul %158, %157, %cst_26 {dimension_numbers = #tpu.dot_dimension_numbers<[1], [0], [0], [1], [0, 0, 1, 1], [], []>} : vector<16x16xf32>, vector<16x256xf32>, vector<16x256xf32> -> vector<16x256xf32>
    %c0_27 = arith.constant 0 : index
    %c0_28 = arith.constant 0 : index
    %160 = vector.load %arg2[%c0_27, %c0_28] : memref<8x2xf32, #tpu.memory_space<vmem>>, vector<8x2xf32>
    %cst_29 = arith.constant dense<0.000000e+00> : vector<16xf32>
    %161 = vector.multi_reduction <add>, %159, %cst_29 [1] : vector<16x256xf32> to vector<16xf32>
    %162 = vector.shape_cast %161 : vector<16xf32> to vector<16x1xf32>
    %163 = arith.mulf %159, %159 : vector<16x256xf32>
    %cst_30 = arith.constant dense<0.000000e+00> : vector<16xf32>
    %164 = vector.multi_reduction <add>, %163, %cst_30 [1] : vector<16x256xf32> to vector<16xf32>
    %165 = vector.shape_cast %164 : vector<16xf32> to vector<16x1xf32>
    %166 = vector.extract_strided_slice %162 {offsets = [0, 0], sizes = [8, 1], strides = [1, 1]} : vector<16x1xf32> to vector<8x1xf32>
    %cst_31 = arith.constant 0.000000e+00 : f32
    %167 = vector.broadcast %cst_31 : f32 to vector<8x1xf32>
    %168 = arith.addf %167, %166 : vector<8x1xf32>
    %169 = vector.extract_strided_slice %162 {offsets = [8, 0], sizes = [8, 1], strides = [1, 1]} : vector<16x1xf32> to vector<8x1xf32>
    %170 = arith.addf %168, %169 : vector<8x1xf32>
    %cst_32 = arith.constant 0.001953125 : f32
    %171 = vector.broadcast %cst_32 : f32 to vector<8x1xf32>
    %172 = arith.mulf %170, %171 : vector<8x1xf32>
    %173 = vector.extract_strided_slice %165 {offsets = [0, 0], sizes = [8, 1], strides = [1, 1]} : vector<16x1xf32> to vector<8x1xf32>
    %cst_33 = arith.constant 0.000000e+00 : f32
    %174 = vector.broadcast %cst_33 : f32 to vector<8x1xf32>
    %175 = arith.addf %174, %173 : vector<8x1xf32>
    %176 = vector.extract_strided_slice %165 {offsets = [8, 0], sizes = [8, 1], strides = [1, 1]} : vector<16x1xf32> to vector<8x1xf32>
    %177 = arith.addf %175, %176 : vector<8x1xf32>
    %cst_34 = arith.constant 0.001953125 : f32
    %178 = vector.broadcast %cst_34 : f32 to vector<8x1xf32>
    %179 = arith.mulf %177, %178 : vector<8x1xf32>
    %180 = arith.mulf %172, %172 : vector<8x1xf32>
    %181 = arith.subf %179, %180 : vector<8x1xf32>
    %182 = vector.extract_strided_slice %160 {offsets = [0, 0], sizes = [8, 1], strides = [1, 1]} : vector<8x2xf32> to vector<8x1xf32>
    %cst_35 = arith.constant 9.99999974E-6 : f32
    %183 = vector.broadcast %cst_35 : f32 to vector<8x1xf32>
    %184 = arith.addf %181, %183 : vector<8x1xf32>
    %185 = math.rsqrt %184 : vector<8x1xf32>
    %186 = arith.mulf %182, %185 : vector<8x1xf32>
    %187 = vector.extract_strided_slice %160 {offsets = [0, 1], sizes = [8, 1], strides = [1, 1]} : vector<8x2xf32> to vector<8x1xf32>
    %188 = arith.mulf %186, %172 : vector<8x1xf32>
    %189 = arith.subf %187, %188 : vector<8x1xf32>
    %190 = tpu.concatenate %186, %186 in 0 : vector<8x1xf32>, vector<8x1xf32> -> vector<16x1xf32>
    %191 = tpu.concatenate %189, %189 in 0 : vector<8x1xf32>, vector<8x1xf32> -> vector<16x1xf32>
    %192 = vector.broadcast %190 : vector<16x1xf32> to vector<16x256xf32>
    %193 = arith.mulf %159, %192 : vector<16x256xf32>
    %194 = vector.broadcast %191 : vector<16x1xf32> to vector<16x256xf32>
    %195 = arith.addf %193, %194 : vector<16x256xf32>
    %cst_36 = arith.constant 0.000000e+00 : f32
    %196 = vector.broadcast %cst_36 : f32 to vector<16x256xf32>
    %197 = arith.maximumf %195, %196 : vector<16x256xf32>
    %c0_37 = arith.constant 0 : index
    %c0_38 = arith.constant 0 : index
    %198 = vector.load %arg4[%c0_37, %c0_38] : memref<16x256xf32, #tpu.memory_space<vmem>>, vector<16x256xf32>
    tpu.vector_store %arg4[%c0_37, %c0_38], %197 {strides = array<i32>} : memref<16x256xf32, #tpu.memory_space<vmem>>, vector<16x256xf32>,
    return
  }
}

</mosaic_0001>

<llo_original>
// kernel: morphological_layer.1
$region0: #{morphological_layer.1}
  #allocation0 [shape = 'u32[]', space=smem, size = 0x4, offset = 0x4, fixed_abs, tag = 'smem constant byte address 0x4 - core index']
  #allocation1 [shape = 'u32[144,128]{1,0:T(1,128)}', space=vmem, size = 0x12000, scoped, tag = 'internal scratch']
  %s0 = inlined_call_operand.vmem [shape: f32[16,9], index: 0, kind: input, shape index: {}]
  %s1 = inlined_call_operand.vmem [shape: f32[16,16], index: 1, kind: input, shape index: {}]
  %s2 = inlined_call_operand.vmem [shape: f32[8,2], index: 2, kind: input, shape index: {}]
  %s3 = inlined_call_operand.vmem [shape: f32[8,256], index: 3, kind: input, shape index: {}]
  %s4 = inlined_call_operand.vmem [shape: f32[16,256], index: 4, kind: output, shape index: {}]
  %s5 = sld [smem:[#allocation0]]
  $region26: #{morphological_layer.1} parent=0
    _
  %s7 = ssub.s32 1, %s5
  %s8 = scalar_select 0, %s7, %s5
  // Predicated region
  $region2: #{morphological_layer.1} parent=0 // pred_check
    _
  $region3: #{morphological_layer.1} parent=0 // pred_check_branch
    %10 = sbr.rel (0) target = $region5
  $region4: #{morphological_layer.1} parent=0 // pred_region
    _
  $region5: #{morphological_layer.1} parent=0 // pred_fallthru
    _
  // Predicated region
  $region6: #{morphological_layer.1} parent=0 // pred_check
    _
  $region7: #{morphological_layer.1} parent=0 // pred_check_branch
    %12 = sbr.rel (0) target = $region9
  $region8: #{morphological_layer.1} parent=0 // pred_region
    _
  $region9: #{morphological_layer.1} parent=0 // pred_fallthru
    _
  // Predicated region
  $region10: #{morphological_layer.1} parent=0 // pred_check
    _
  $region11: #{morphological_layer.1} parent=0 // pred_check_branch
    %14 = sbr.rel (0) target = $region13
  $region12: #{morphological_layer.1} parent=0 // pred_region
    _
  $region13: #{morphological_layer.1} parent=0 // pred_fallthru
    _
  // Predicated region
  $region14: #{morphological_layer.1} parent=0 // pred_check
    _
  $region15: #{morphological_layer.1} parent=0 // pred_check_branch
    %16 = sbr.rel (0) target = $region17
  $region16: #{morphological_layer.1} parent=0 // pred_region
    _
  $region17: #{morphological_layer.1} parent=0 // pred_fallthru
    _
  %v17 = vld [vmem:[%s3] sm:$0xff]
  %v18 = vld [vmem:[%s3 + $0x8] sm:$0xff]
  %v19 = vlaneseq
  %v20 = vand.u32 %v19, 127
  %v21 = vadd.s32 %v20, 128
  %v22 = vand.u32 %v20, 15
  %v23 = vand.u32 %v21, 15
  %vm24 = vcmp.eq.s32.totalorder %v22, 0
  %vm25 = vcmp.eq.s32.totalorder %v23, 0
  %vm26 = vcmp.eq.s32.totalorder %v22, 15
  %vm27 = vcmp.eq.s32.totalorder %v23, 15
  %vm28 = vcmp.lt.s32.totalorder %v20, 16
  %vm29 = vcmp.lt.s32.totalorder %v21, 16
  %vm30 = vcmp.ge.s32.totalorder %v20, 240
  %vm31 = vcmp.ge.s32.totalorder %v21, 240
  %vm32 = vmor %vm28, %vm24
  %vm33 = vmor %vm29, %vm25
  %vm34 = vmor %vm28, %vm26
  %vm35 = vmor %vm29, %vm27
  %vm36 = vmor %vm30, %vm24
  %vm37 = vmor %vm31, %vm25
  %vm38 = vmor %vm30, %vm26
  %vm39 = vmor %vm31, %vm27
  %v40 = vld [vmem:[%s0] sm:$0xff]
  %v41 = vld [vmem:[%s0 + $0x8] sm:$0xff]
  %42 = vrot.lane.b32.xlu0 %v17, 17
  %v43 = vpop.permute.xlu0 %42
  %44 = vrot.lane.b32.xlu0 %v18, 17
  %v45 = vpop.permute.xlu0 %44
  %vm46 = vcmp.lt.s32.totalorder %v20, 17
  %v47 = vsel %vm46, %v43, %v45
  %v48 = vsel %vm46, %v45, %v43
  %v49 = vsel %vm32, 1, 0
  %v50 = vsel %vm33, 1, 0
  %vm51 = vcmp.eq.s32.totalorder %v49, 1
  %vm52 = vcmp.eq.s32.totalorder %v50, 1
  %v53 = vsel %vm51, 0.0, %v48
  %v54 = vsel %vm52, 0.0, %v47
  %56 = vset.pattern.permute.xlu0 0
  %57 = vperm.xlu0 %56, %v40
  %v58 = vpop.permute.xlu0 %57
  %v60 = vmul.f32 %v58, %v53
  %v61 = vmul.f32 %v58, %v54
  %v62 = vadd.f32 %v60, 0.0
  %v63 = vadd.f32 %v61, 0.0
  %65 = vset.pattern.permute.xlu0 0
  %66 = vperm.xlu0 %65, %v41
  %v67 = vpop.permute.xlu0 %66
  %v69 = vmul.f32 %v67, %v53
  %v70 = vmul.f32 %v67, %v54
  %v71 = vadd.f32 %v69, 0.0
  %v72 = vadd.f32 %v70, 0.0
  %73 = vrot.lane.b32.xlu0 %v17, 16
  %v74 = vpop.permute.xlu0 %73
  %75 = vrot.lane.b32.xlu0 %v18, 16
  %v76 = vpop.permute.xlu0 %75
  %v77 = vsel %vm28, %v74, %v76
  %v78 = vsel %vm28, %v76, %v74
  %v79 = vsel %vm28, 1, 0
  %v80 = vsel %vm29, 1, 0
  %vm81 = vcmp.eq.s32.totalorder %v79, 1
  %vm82 = vcmp.eq.s32.totalorder %v80, 1
  %v83 = vsel %vm81, 0.0, %v78
  %v84 = vsel %vm82, 0.0, %v77
  %85 = vset.pattern.permute.xlu0 1
  %86 = vperm.xlu0 %85, %v40
  %v87 = vpop.permute.xlu0 %86
  %v89 = vmul.f32 %v87, %v83
  %v90 = vmul.f32 %v87, %v84
  %v91 = vadd.f32 %v62, %v89
  %v92 = vadd.f32 %v63, %v90
  %93 = vset.pattern.permute.xlu0 1
  %94 = vperm.xlu0 %93, %v41
  %v95 = vpop.permute.xlu0 %94
  %v97 = vmul.f32 %v95, %v83
  %v98 = vmul.f32 %v95, %v84
  %v99 = vadd.f32 %v71, %v97
  %v100 = vadd.f32 %v72, %v98
  %101 = vrot.lane.b32.xlu0 %v17, 15
  %v102 = vpop.permute.xlu0 %101
  %103 = vrot.lane.b32.xlu0 %v18, 15
  %v104 = vpop.permute.xlu0 %103
  %vm105 = vcmp.lt.s32.totalorder %v20, 15
  %v106 = vsel %vm105, %v102, %v104
  %v107 = vsel %vm105, %v104, %v102
  %v108 = vsel %vm34, 1, 0
  %v109 = vsel %vm35, 1, 0
  %vm110 = vcmp.eq.s32.totalorder %v108, 1
  %vm111 = vcmp.eq.s32.totalorder %v109, 1
  %v112 = vsel %vm110, 0.0, %v107
  %v113 = vsel %vm111, 0.0, %v106
  %114 = vset.pattern.permute.xlu0 2
  %115 = vperm.xlu0 %114, %v40
  %v116 = vpop.permute.xlu0 %115
  %v118 = vmul.f32 %v116, %v112
  %v119 = vmul.f32 %v116, %v113
  %v120 = vadd.f32 %v91, %v118
  %v121 = vadd.f32 %v92, %v119
  %122 = vset.pattern.permute.xlu0 2
  %123 = vperm.xlu0 %122, %v41
  %v124 = vpop.permute.xlu0 %123
  %v126 = vmul.f32 %v124, %v112
  %v127 = vmul.f32 %v124, %v113
  %v128 = vadd.f32 %v99, %v126
  %v129 = vadd.f32 %v100, %v127
  %130 = vrot.lane.b32.xlu0 %v17, 1
  %v131 = vpop.permute.xlu0 %130
  %132 = vrot.lane.b32.xlu0 %v18, 1
  %v133 = vpop.permute.xlu0 %132
  %vm134 = vcmp.lt.s32.totalorder %v20, 1
  %v135 = vsel %vm134, %v131, %v133
  %v136 = vsel %vm134, %v133, %v131
  %v137 = vsel %vm24, 1, 0
  %v138 = vsel %vm25, 1, 0
  %vm139 = vcmp.eq.s32.totalorder %v137, 1
  %vm140 = vcmp.eq.s32.totalorder %v138, 1
  %v141 = vsel %vm139, 0.0, %v136
  %v142 = vsel %vm140, 0.0, %v135
  %143 = vset.pattern.permute.xlu0 3
  %144 = vperm.xlu0 %143, %v40
  %v145 = vpop.permute.xlu0 %144
  %v147 = vmul.f32 %v145, %v141
  %v148 = vmul.f32 %v145, %v142
  %v149 = vadd.f32 %v120, %v147
  %v150 = vadd.f32 %v121, %v148
  %151 = vset.pattern.permute.xlu0 3
  %152 = vperm.xlu0 %151, %v41
  %v153 = vpop.permute.xlu0 %152
  %v155 = vmul.f32 %v153, %v141
  %v156 = vmul.f32 %v153, %v142
  %v157 = vadd.f32 %v128, %v155
  %v158 = vadd.f32 %v129, %v156
  %159 = vset.pattern.permute.xlu0 4
  %160 = vperm.xlu0 %159, %v40
  %v161 = vpop.permute.xlu0 %160
  %v163 = vmul.f32 %v161, %v17
  %v164 = vmul.f32 %v161, %v18
  %v165 = vadd.f32 %v149, %v163
  %v166 = vadd.f32 %v150, %v164
  %167 = vset.pattern.permute.xlu0 4
  %168 = vperm.xlu0 %167, %v41
  %v169 = vpop.permute.xlu0 %168
  %v171 = vmul.f32 %v169, %v17
  %v172 = vmul.f32 %v169, %v18
  %v173 = vadd.f32 %v157, %v171
  %v174 = vadd.f32 %v158, %v172
  %175 = vrot.lane.b32.xlu0 %v17, 127
  %v176 = vpop.permute.xlu0 %175
  %177 = vrot.lane.b32.xlu0 %v18, 127
  %v178 = vpop.permute.xlu0 %177
  %vm179 = vcmp.lt.s32.totalorder %v20, 127
  %v180 = vsel %vm179, %v176, %v178
  %v181 = vsel %vm179, %v178, %v176
  %v182 = vsel %vm26, 1, 0
  %v183 = vsel %vm27, 1, 0
  %vm184 = vcmp.eq.s32.totalorder %v182, 1
  %vm185 = vcmp.eq.s32.totalorder %v183, 1
  %v186 = vsel %vm184, 0.0, %v180
  %v187 = vsel %vm185, 0.0, %v181
  %188 = vset.pattern.permute.xlu0 5
  %189 = vperm.xlu0 %188, %v40
  %v190 = vpop.permute.xlu0 %189
  %v192 = vmul.f32 %v190, %v186
  %v193 = vmul.f32 %v190, %v187
  %v194 = vadd.f32 %v165, %v192
  %v195 = vadd.f32 %v166, %v193
  %196 = vset.pattern.permute.xlu0 5
  %197 = vperm.xlu0 %196, %v41
  %v198 = vpop.permute.xlu0 %197
  %v200 = vmul.f32 %v198, %v186
  %v201 = vmul.f32 %v198, %v187
  %v202 = vadd.f32 %v173, %v200
  %v203 = vadd.f32 %v174, %v201
  %204 = vrot.lane.b32.xlu0 %v17, 113
  %v205 = vpop.permute.xlu0 %204
  %206 = vrot.lane.b32.xlu0 %v18, 113
  %v207 = vpop.permute.xlu0 %206
  %vm208 = vcmp.lt.s32.totalorder %v20, 113
  %v209 = vsel %vm208, %v205, %v207
  %v210 = vsel %vm208, %v207, %v205
  %v211 = vsel %vm36, 1, 0
  %v212 = vsel %vm37, 1, 0
  %vm213 = vcmp.eq.s32.totalorder %v211, 1
  %vm214 = vcmp.eq.s32.totalorder %v212, 1
  %v215 = vsel %vm213, 0.0, %v209
  %v216 = vsel %vm214, 0.0, %v210
  %217 = vset.pattern.permute.xlu0 6
  %218 = vperm.xlu0 %217, %v40
  %v219 = vpop.permute.xlu0 %218
  %v221 = vmul.f32 %v219, %v215
  %v222 = vmul.f32 %v219, %v216
  %v223 = vadd.f32 %v194, %v221
  %v224 = vadd.f32 %v195, %v222
  %225 = vset.pattern.permute.xlu0 6
  %226 = vperm.xlu0 %225, %v41
  %v227 = vpop.permute.xlu0 %226
  %v229 = vmul.f32 %v227, %v215
  %v230 = vmul.f32 %v227, %v216
  %v231 = vadd.f32 %v202, %v229
  %v232 = vadd.f32 %v203, %v230
  %233 = vrot.lane.b32.xlu0 %v17, 112
  %v234 = vpop.permute.xlu0 %233
  %235 = vrot.lane.b32.xlu0 %v18, 112
  %v236 = vpop.permute.xlu0 %235
  %vm237 = vcmp.lt.s32.totalorder %v20, 112
  %v238 = vsel %vm237, %v234, %v236
  %v239 = vsel %vm237, %v236, %v234
  %v240 = vsel %vm30, 1, 0
  %v241 = vsel %vm31, 1, 0
  %vm242 = vcmp.eq.s32.totalorder %v240, 1
  %vm243 = vcmp.eq.s32.totalorder %v241, 1
  %v244 = vsel %vm242, 0.0, %v238
  %v245 = vsel %vm243, 0.0, %v239
  %246 = vset.pattern.permute.xlu0 7
  %247 = vperm.xlu0 %246, %v40
  %v248 = vpop.permute.xlu0 %247
  %v250 = vmul.f32 %v248, %v244
  %v251 = vmul.f32 %v248, %v245
  %v252 = vadd.f32 %v223, %v250
  %v253 = vadd.f32 %v224, %v251
  %254 = vset.pattern.permute.xlu0 7
  %255 = vperm.xlu0 %254, %v41
  %v256 = vpop.permute.xlu0 %255
  %v258 = vmul.f32 %v256, %v244
  %v259 = vmul.f32 %v256, %v245
  %v260 = vadd.f32 %v231, %v258
  %v261 = vadd.f32 %v232, %v259
  %262 = vrot.lane.b32.xlu0 %v17, 111
  %v263 = vpop.permute.xlu0 %262
  %264 = vrot.lane.b32.xlu0 %v18, 111
  %v265 = vpop.permute.xlu0 %264
  %vm266 = vcmp.lt.s32.totalorder %v20, 111
  %v267 = vsel %vm266, %v263, %v265
  %v268 = vsel %vm266, %v265, %v263
  %v269 = vsel %vm38, 1, 0
  %v270 = vsel %vm39, 1, 0
  %vm271 = vcmp.eq.s32.totalorder %v269, 1
  %vm272 = vcmp.eq.s32.totalorder %v270, 1
  %v273 = vsel %vm271, 0.0, %v267
  %v274 = vsel %vm272, 0.0, %v268
  %275 = vset.pattern.permute.xlu0 8
  %276 = vperm.xlu0 %275, %v40
  %v277 = vpop.permute.xlu0 %276
  %v279 = vmul.f32 %v277, %v273
  %v280 = vmul.f32 %v277, %v274
  %v281 = vadd.f32 %v252, %v279
  %v282 = vadd.f32 %v253, %v280
  %283 = vset.pattern.permute.xlu0 8
  %284 = vperm.xlu0 %283, %v41
  %v285 = vpop.permute.xlu0 %284
  %v287 = vmul.f32 %v285, %v273
  %v288 = vmul.f32 %v285, %v274
  %v289 = vadd.f32 %v260, %v287
  %v290 = vadd.f32 %v261, %v288
  %291 = vrot.lane.b32.xlu0 %v281, 1
  %v292 = vpop.permute.xlu0 %291
  %293 = vrot.lane.b32.xlu0 %v289, 1
  %v294 = vpop.permute.xlu0 %293
  %295 = vrot.lane.b32.xlu0 %v282, 1
  %v296 = vpop.permute.xlu0 %295
  %297 = vrot.lane.b32.xlu0 %v290, 1
  %v298 = vpop.permute.xlu0 %297
  %v299 = vsel %vm134, %v292, %v296
  %v300 = vsel %vm134, %v294, %v298
  %v301 = vsel %vm134, %v296, %v292
  %v302 = vsel %vm134, %v298, %v294
  %v303 = vsel %vm139, -inf, %v301
  %v304 = vsel %vm140, -inf, %v299
  %v305 = vsel %vm139, -inf, %v302
  %v306 = vsel %vm140, -inf, %v300
  %v307 = vmax.f32 %v303, %v281
  %v308 = vmax.f32 %v304, %v282
  %v309 = vmax.f32 %v305, %v289
  %v310 = vmax.f32 %v306, %v290
  %311 = vrot.lane.b32.xlu0 %v281, 127
  %v312 = vpop.permute.xlu0 %311
  %313 = vrot.lane.b32.xlu0 %v289, 127
  %v314 = vpop.permute.xlu0 %313
  %315 = vrot.lane.b32.xlu0 %v282, 127
  %v316 = vpop.permute.xlu0 %315
  %317 = vrot.lane.b32.xlu0 %v290, 127
  %v318 = vpop.permute.xlu0 %317
  %v319 = vsel %vm179, %v312, %v316
  %v320 = vsel %vm179, %v314, %v318
  %v321 = vsel %vm179, %v316, %v312
  %v322 = vsel %vm179, %v318, %v314
  %v323 = vsel %vm184, -inf, %v319
  %v324 = vsel %vm185, -inf, %v321
  %v325 = vsel %vm184, -inf, %v320
  %v326 = vsel %vm185, -inf, %v322
  %v327 = vmax.f32 %v307, %v323
  %v328 = vmax.f32 %v308, %v324
  %v329 = vmax.f32 %v309, %v325
  %v330 = vmax.f32 %v310, %v326
  %331 = vrot.lane.b32.xlu0 %v327, 16
  %v332 = vpop.permute.xlu0 %331
  %333 = vrot.lane.b32.xlu0 %v329, 16
  %v334 = vpop.permute.xlu0 %333
  %335 = vrot.lane.b32.xlu0 %v328, 16
  %v336 = vpop.permute.xlu0 %335
  %337 = vrot.lane.b32.xlu0 %v330, 16
  %v338 = vpop.permute.xlu0 %337
  %v339 = vsel %vm28, %v332, %v336
  %v340 = vsel %vm28, %v334, %v338
  %v341 = vsel %vm28, %v336, %v332
  %v342 = vsel %vm28, %v338, %v334
  %v343 = vsel %vm81, -inf, %v341
  %v344 = vsel %vm82, -inf, %v339
  %v345 = vsel %vm81, -inf, %v342
  %v346 = vsel %vm82, -inf, %v340
  %v347 = vmax.f32 %v343, %v327
  %v348 = vmax.f32 %v344, %v328
  %v349 = vmax.f32 %v345, %v329
  %v350 = vmax.f32 %v346, %v330
  %351 = vrot.lane.b32.xlu0 %v327, 112
  %v352 = vpop.permute.xlu0 %351
  %353 = vrot.lane.b32.xlu0 %v329, 112
  %v354 = vpop.permute.xlu0 %353
  %355 = vrot.lane.b32.xlu0 %v328, 112
  %v356 = vpop.permute.xlu0 %355
  %357 = vrot.lane.b32.xlu0 %v330, 112
  %v358 = vpop.permute.xlu0 %357
  %v359 = vsel %vm237, %v352, %v356
  %v360 = vsel %vm237, %v354, %v358
  %v361 = vsel %vm237, %v356, %v352
  %v362 = vsel %vm237, %v358, %v354
  %v363 = vsel %vm242, -inf, %v359
  %v364 = vsel %vm243, -inf, %v361
  %v365 = vsel %vm242, -inf, %v360
  %v366 = vsel %vm243, -inf, %v362
  %v367 = vmax.f32 %v347, %v363
  %v368 = vmax.f32 %v348, %v364
  %v369 = vmax.f32 %v349, %v365
  %v370 = vmax.f32 %v350, %v366
  %v371 = vld [vmem:[%s1] sm:$0xff]
  %v372 = vld [vmem:[%s1 + $0x8] sm:$0xff]
  %vm373 = vcmask 130048
  %v375 = vsel %vm373, %v371, 0
  %v378 = vsel %vm373, %v372, 0
  %380 = vmatprep.subr.mxu0 %v368
  %381 = vmatpush1.msra.mxu0 %v367
  %382 = vmatprep.subr.mxu0 %v370
  %383 = vmatpush1.msra.mxu0 %v369
  %384 = vmatprep.subr.mxu0 0.0
  %385 = vmatpush1.msra.mxu0 0.0
  %386 = vmatprep.subr.mxu0 0.0
  %387 = vmatpush1.msra.mxu0 0.0
  %388 = vmatprep.subr.mxu0 0.0
  %389 = vmatpush1.msra.mxu0 0.0
  %390 = vmatprep.subr.mxu0 0.0
  %391 = vmatpush1.msra.mxu0 0.0
  %392 = vmatprep.subr.mxu0 0.0
  %393 = vmatpush1.msra.mxu0 0.0
  %394 = vmatprep.subr.mxu0 0.0
  %395 = vmatpush1.msra.mxu0 0.0
  %396 = vmatprep.subr.mxu0 0.0
  %397 = vmatpush1.msra.mxu0 0.0
  %398 = vmatprep.subr.mxu0 0.0
  %399 = vmatpush1.msra.mxu0 0.0
  %400 = vmatprep.subr.mxu0 0.0
  %401 = vmatpush1.msra.mxu0 0.0
  %402 = vmatprep.subr.mxu0 0.0
  %403 = vmatpush1.msra.mxu0 0.0
  %404 = vmatprep.subr.mxu0 0.0
  %405 = vmatpush1.msra.mxu0 0.0
  %406 = vmatprep.subr.mxu0 0.0
  %407 = vmatpush1.msra.mxu0 0.0
  %408 = vmatprep.subr.mxu0 0.0
  %409 = vmatpush1.msra.mxu0 0.0
  %410 = vmatprep.subr.mxu0 0.0
  %411 = vmatpush1.msra.mxu0 0.0
  %412 = vmatprep.subr.mxu0 0.0
  %413 = vmatpush1.msra.mxu0 0.0
  %414 = vmatprep.subr.mxu0 0.0
  %415 = vmatpush1.msra.mxu0 0.0
  %416 = vmatprep.subr.mxu0 0.0
  %417 = vmatpush1.msra.mxu0 0.0
  %418 = vmatprep.subr.mxu0 0.0
  %419 = vmatpush1.msra.mxu0 0.0
  %420 = vmatprep.subr.mxu0 0.0
  %421 = vmatpush1.msra.mxu0 0.0
  %422 = vmatprep.subr.mxu0 0.0
  %423 = vmatpush1.msra.mxu0 0.0
  %424 = vmatprep.subr.mxu0 0.0
  %425 = vmatpush1.msra.mxu0 0.0
  %426 = vmatprep.subr.mxu0 0.0
  %427 = vmatpush1.msra.mxu0 0.0
  %428 = vmatprep.subr.mxu0 0.0
  %429 = vmatpush1.msra.mxu0 0.0
  %430 = vmatprep.subr.mxu0 0.0
  %431 = vmatpush1.msra.mxu0 0.0
  %432 = vmatprep.subr.mxu0 0.0
  %433 = vmatpush1.msra.mxu0 0.0
  %434 = vmatprep.subr.mxu0 0.0
  %435 = vmatpush1.msra.mxu0 0.0
  %436 = vmatprep.subr.mxu0 0.0
  %437 = vmatpush1.msra.mxu0 0.0
  %438 = vmatprep.subr.mxu0 0.0
  %439 = vmatpush1.msra.mxu0 0.0
  %440 = vmatprep.subr.mxu0 0.0
  %441 = vmatpush1.msra.mxu0 0.0
  %442 = vmatprep.subr.mxu0 0.0
  %443 = vmatpush1.msra.mxu0 0.0
  %444 = vmatprep.mubr.f32.mxu0 0.0
  %445 = vmatmul.mubr.f32.gmra.mrb[0].mxu0 %v375
  %v446 = vpop.f32.mrb[0].mxu0
  %v447 = vadd.f32 0.0, %v446
  %v448 = vpop.f32.mrb[0].mxu0
  %v449 = vadd.f32 0.0, %v448
  %450 = vmatprep.mubr.f32.mxu0 0.0
  %451 = vmatmul.mubr.f32.gmra.mrb[0].mxu0 %v378
  %v452 = vpop.f32.mrb[0].mxu0
  %v453 = vadd.f32 0.0, %v452
  %v454 = vpop.f32.mrb[0].mxu0
  %v455 = vadd.f32 0.0, %v454
  %456 = vdwg.mxu0
  %v457 = vld [vmem:[%s2] sm:$0xff]
  %v458 = vadd.f32 %v447, %v449
  %459 = vadd.xlane.f32.xlu0 %v458
  %v460 = vpop.xlane.xlu0 %459
  %v461 = vadd.f32 %v453, %v455
  %462 = vadd.xlane.f32.xlu0 %v461
  %v463 = vpop.xlane.xlu0 %462
  %v464 = vmul.f32 %v447, %v447
  %v465 = vmul.f32 %v449, %v449
  %v466 = vmul.f32 %v453, %v453
  %v467 = vmul.f32 %v455, %v455
  %v468 = vadd.f32 %v464, %v465
  %469 = vadd.xlane.f32.xlu0 %v468
  %v470 = vpop.xlane.xlu0 %469
  %v471 = vadd.f32 %v466, %v467
  %472 = vadd.xlane.f32.xlu0 %v471
  %v473 = vpop.xlane.xlu0 %472
  %v474 = vadd.f32 %v460, 0.0
  %v475 = vadd.f32 %v474, %v463
  %v476 = vmul.f32 %v475, 0.001953125
  %v477 = vadd.f32 %v470, 0.0
  %v478 = vadd.f32 %v477, %v473
  %v479 = vmul.f32 %v478, 0.001953125
  %v480 = vmul.f32 %v476, %v476
  %v481 = vsub.f32 %v479, %v480
  %v482 = vadd.f32 %v481, 1e-05
  %v483 = vrsqrt.pop %v482
  %v484 = vmul.f32 %v457, %v483
  %v485 = vmul.f32 %v484, %v476
  %487 = vrot.lane.b32.xlu0 %v485, 1
  %v488 = vpop.permute.xlu0 %487
  %v490 = vsub.f32 %v457, %v488
  %492 = vset.pattern.permute.xlu0 0
  %493 = vperm.xlu0 %492, %v484
  %v494 = vpop.permute.xlu0 %493
  %v496 = vmul.f32 %v447, %v494
  %v497 = vmul.f32 %v449, %v494
  %v498 = vmul.f32 %v453, %v494
  %v499 = vmul.f32 %v455, %v494
  %501 = vset.pattern.permute.xlu0 1
  %502 = vperm.xlu0 %501, %v490
  %v503 = vpop.permute.xlu0 %502
  %v505 = vadd.f32 %v496, %v503
  %v506 = vadd.f32 %v497, %v503
  %v507 = vadd.f32 %v498, %v503
  %v508 = vadd.f32 %v499, %v503
  %v509 = vmax.f32 %v505, 0.0
  %v510 = vmax.f32 %v506, 0.0
  %v511 = vmax.f32 %v507, 0.0
  %v512 = vmax.f32 %v508, 0.0
  %513 = vst [vmem:[%s4] sm:$0xff] %v509
  %514 = vst [vmem:[%s4 + $0x8] sm:$0xff] %v510
  %515 = vst [vmem:[%s4 + $0x10] sm:$0xff] %v511
  %516 = vst [vmem:[%s4 + $0x18] sm:$0xff] %v512
  // Predicated region
  $region18: #{morphological_layer.1} parent=0 // pred_check
    _
  $region19: #{morphological_layer.1} parent=0 // pred_check_branch
    %518 = sbr.rel (0) target = $region21
  $region20: #{morphological_layer.1} parent=0 // pred_region
    _
  $region21: #{morphological_layer.1} parent=0 // pred_fallthru
    _
  // Predicated region
  $region22: #{morphological_layer.1} parent=0 // pred_check
    _
  $region23: #{morphological_layer.1} parent=0 // pred_check_branch
    %520 = sbr.rel (0) target = $region25
  $region24: #{morphological_layer.1} parent=0 // pred_region
    _
  $region25: #{morphological_layer.1} parent=0 // pred_fallthru
    _

</llo_original>
